<compile_context>
chip_gen: v7x
topology: tpu7x:2x2x1
jax: 0.10.0
libtpu: 0.0.40
codegen_flags: <defaults>
</compile_context>

<pallas_src>
import functools
import math

import jax
import jax.numpy as jnp
from jax import lax
from jax.experimental import pallas as pl
from jax.experimental.pallas import tpu as pltpu


def _round_up(n, m):
    return (n + m - 1) // m * m


# ---------------------------------------------------------------------------
# Fused kernel: one grid step = t_chunk time steps for the whole padded batch.
# ---------------------------------------------------------------------------
def _rnn_chunk_kernel(x_ref, w_ih_t_ref, b_ref, w_hh_t_ref, h0_ref,
                      out_ref, h_scratch, xp_scratch,
                      *, t_chunk, b_pad, nonlinearity):
    """
    x_ref      : (t_chunk*b_pad, I_pad) compute dtype -- this chunk's inputs
    w_ih_t_ref : (I_pad, H_pad)         compute dtype -- VMEM-resident
    b_ref      : (1, H_pad)             f32           -- folded bias (b_ih + b_hh)
    w_hh_t_ref : (H_pad, H_pad)         f32           -- VMEM-resident
    h0_ref     : (b_pad, H_pad)         f32           -- initial hidden state
    out_ref    : (t_chunk*b_pad, H_pad) out dtype
    h_scratch  : (b_pad, H_pad)         f32           -- carried hidden state
    xp_scratch : (t_chunk*b_pad, H_pad) f32           -- chunk input projection
    """
    if nonlinearity == "tanh":
        act = jnp.tanh
    else:  # 'relu'
        act = lambda v: jnp.maximum(v, 0.0)

    @pl.when(pl.program_id(0) == 0)
    def _():
        h_scratch[...] = h0_ref[...]

    # Fused chunk input projection: one large, MXU-friendly matmul with no
    # dependence on h (off the serial critical path).
    xp_scratch[...] = (
        jnp.dot(x_ref[...], w_ih_t_ref[...],
                preferred_element_type=jnp.float32)
        + b_ref[...])

    w_hh = w_hh_t_ref[...]  # (H_pad, H_pad) f32, resident across the grid

    def step(row, h):
        pre = xp_scratch[pl.ds(row, b_pad), :] + jnp.dot(
            h, w_hh, preferred_element_type=jnp.float32)
        h_new = act(pre)
        out_ref[pl.ds(row, b_pad), :] = h_new.astype(out_ref.dtype)
        return h_new

    h = h_scratch[...]
    if t_chunk <= 8:
        # Short chunk: fully unrolled static loop (static sublane offsets).
        for t in range(t_chunk):
            h = step(t * b_pad, h)
    else:
        # Long chunk: rolled loop with bounded unroll (avoids vreg spills).
        def body(t, h):
            return step(pl.multiple_of(t * b_pad, b_pad), h)
        h = lax.fori_loop(0, t_chunk, body, h, unroll=8)

    h_scratch[...] = h  # carry to the next time chunk


def simple_rnn_pallas(x, weight_ih, weight_hh, bias_ih=None, bias_hh=None,
                      hx=None, *, nonlinearity="tanh", batch_first=False,
                      t_chunk=32, compute_dtype=jnp.bfloat16):
    """Forward pass of SimpleRNN_n. Returns (output, h_last)."""
    if batch_first:
        x = jnp.swapaxes(x, 0, 1)
    S, B, I = x.shape
    H = weight_hh.shape[0]
    out_dtype = x.dtype

    # ---- pad to TPU tiling: batch -> 8 sublanes, input/hidden -> 128 lanes ----
    B_pad = _round_up(B, 8)
    I_pad = _round_up(I, 128)
    H_pad = _round_up(H, 128)
    # Don't over-pad short sequences with a huge chunk.
    t_chunk = max(1, min(t_chunk, _round_up(S, 8)))
    S_pad = _round_up(S, t_chunk)
    R = S_pad * B_pad            # padded rows, time-major (batch fastest)
    TM = t_chunk * B_pad         # rows per grid step

    # Pad + cast x in a single materialization.
    x_p = (jnp.zeros((S_pad, B_pad, I_pad), compute_dtype)
           .at[:S, :B, :I].set(x.astype(compute_dtype)))
    x2 = x_p.reshape(R, I_pad)

    w_ih_t = (jnp.zeros((I_pad, H_pad), compute_dtype)
              .at[:I, :H].set(weight_ih.T.astype(compute_dtype)))
    # W_hh stays f32: the carried hidden state is kept in f32 so quantization
    # error does not compound over the sequence (correctness-review item).
    w_hh_t = jnp.zeros((H_pad, H_pad), jnp.float32).at[:H, :H].set(
        weight_hh.T.astype(jnp.float32))

    bias = jnp.zeros((H,), jnp.float32)
    if bias_ih is not None:
        bias = bias + bias_ih.astype(jnp.float32)
    if bias_hh is not None:
        bias = bias + bias_hh.astype(jnp.float32)
    b = jnp.zeros((1, H_pad), jnp.float32).at[0, :H].set(bias)

    h0 = jnp.zeros((B_pad, H_pad), jnp.float32)
    if hx is not None:
        h0 = h0.at[:B, :H].set(hx.astype(jnp.float32))

    kernel = functools.partial(_rnn_chunk_kernel, t_chunk=t_chunk,
                               b_pad=B_pad, nonlinearity=nonlinearity)

    out2 = pl.pallas_call(
        kernel,
        out_shape=jax.ShapeDtypeStruct((R, H_pad), out_dtype),
        grid_spec=pltpu.PrefetchScalarGridSpec(
            num_scalar_prefetch=0,
            grid=(S_pad // t_chunk,),
            in_specs=[
                pl.BlockSpec((TM, I_pad), lambda c: (c, 0)),      # x chunk
                pl.BlockSpec((I_pad, H_pad), lambda c: (0, 0)),   # W_ih^T (resident)
                pl.BlockSpec((1, H_pad), lambda c: (0, 0)),       # folded bias
                pl.BlockSpec((H_pad, H_pad), lambda c: (0, 0)),   # W_hh^T (resident)
                pl.BlockSpec((B_pad, H_pad), lambda c: (0, 0)),   # h0
            ],
            out_specs=pl.BlockSpec((TM, H_pad), lambda c: (c, 0)),
            scratch_shapes=[
                pltpu.VMEM((B_pad, H_pad), jnp.float32),  # carried hidden state
                pltpu.VMEM((TM, H_pad), jnp.float32),     # chunk input projection
            ],
        ),
        compiler_params=pltpu.CompilerParams(
            # Time chunks are sequentially dependent through h_scratch.
            dimension_semantics=("arbitrary",),
            vmem_limit_bytes=48 * 1024 * 1024,
        ),
    )(x2, w_ih_t, b, w_hh_t, h0)

    out = out2.reshape(S_pad, B_pad, H_pad)[:S, :B, :H]
    h_last = out[-1]
    if batch_first:
        out = jnp.swapaxes(out, 0, 1)
    return out, h_last


def simple_rnn_ref(x, weight_ih, weight_hh, bias_ih, bias_hh, hx=None,
                   nonlinearity="tanh"):
    """Pure-JAX reference mirroring the PyTorch forward (time-major)."""
    S, B, I = x.shape
    H = weight_ih.shape[0]
    act = jnp.tanh if nonlinearity == "tanh" else (lambda v: jnp.maximum(v, 0.0))
    h = jnp.zeros((B, H), jnp.float32) if hx is None else hx.astype(jnp.float32)
    outs = []
    for t in range(S):
        h = act(x[t] @ weight_ih.T + bias_ih + h @ weight_hh.T + bias_hh)
        outs.append(h)
    return jnp.stack(outs, axis=0), h


if __name__ == "__main__":
    # Small shapes consistent with the module: seq=8, batch=2, input=16, hidden=32
    seq_len, batch, input_size, hidden_size = 8, 2, 16, 32

    key = jax.random.PRNGKey(0)
    kx, k1, k2, k3, k4, kx2, kh = jax.random.split(key, 7)

    # Deterministic parameter init matching reset_parameters(): U(-stdv, stdv)
    stdv = 1.0 / math.sqrt(hidden_size)
    weight_ih = jax.random.uniform(k1, (hidden_size, input_size), jnp.float32, -stdv, stdv)
    weight_hh = jax.random.uniform(k2, (hidden_size, hidden_size), jnp.float32, -stdv, stdv)
    bias_ih = jax.random.uniform(k3, (hidden_size,), jnp.float32, -stdv, stdv)
    bias_hh = jax.random.uniform(k4, (hidden_size,), jnp.float32, -stdv, stdv)

    x = jax.random.normal(kx, (seq_len, batch, input_size), jnp.float32)

    out_ref, h_ref = simple_rnn_ref(x, weight_ih, weight_hh, bias_ih, bias_hh)

    # Exact path (f32 matmul operands) — tight tolerance.
    out_f32, h_f32 = simple_rnn_pallas(x, weight_ih, weight_hh, bias_ih, bias_hh,
                                       compute_dtype=jnp.float32)
    jax.block_until_ready((out_f32, h_f32))
    assert out_f32.shape == (seq_len, batch, hidden_size)
    assert h_f32.shape == (batch, hidden_size)
    assert jnp.allclose(out_f32, out_ref, atol=1e-4, rtol=1e-4)
    assert jnp.allclose(h_f32, h_ref, atol=1e-4, rtol=1e-4)

    # Fast path (bf16 input projection, f32 recurrence) — relaxed tolerance.
    out_bf16, h_bf16 = simple_rnn_pallas(x, weight_ih, weight_hh, bias_ih, bias_hh,
                                         compute_dtype=jnp.bfloat16)
    jax.block_until_ready((out_bf16, h_bf16))
    assert jnp.allclose(out_bf16, out_ref, atol=5e-2, rtol=5e-2)
    assert jnp.allclose(h_bf16, h_ref, atol=5e-2, rtol=5e-2)

    # Longer sequence + provided initial hidden state: exercises the multi-chunk
    # grid, the rolled lax.fori_loop path and error accumulation over time.
    seq_len2 = 40
    x_long = jax.random.normal(kx2, (seq_len2, batch, input_size), jnp.float32)
    hx0 = jax.random.normal(kh, (batch, hidden_size), jnp.float32) * 0.1
    out_ref2, h_ref2 = simple_rnn_ref(x_long, weight_ih, weight_hh, bias_ih, bias_hh, hx0)
    out_l, h_l = simple_rnn_pallas(x_long, weight_ih, weight_hh, bias_ih, bias_hh,
                                   hx=hx0, t_chunk=32, compute_dtype=jnp.bfloat16)
    jax.block_until_ready((out_l, h_l))
    assert out_l.shape == (seq_len2, batch, hidden_size)
    assert jnp.allclose(out_l, out_ref2, atol=5e-2, rtol=5e-2)
    assert jnp.allclose(h_l, h_ref2, atol=5e-2, rtol=5e-2)

    print("KERNEL_OK")
</pallas_src>

<mosaic_0001>
module attributes {stable_mosaic.version = 11 : i64} {
  func.func @_rnn_chunk_kernel(%arg0: i32, %arg1: memref<64x128xf32, #tpu.memory_space<vmem>>, %arg2: memref<128x128xf32, #tpu.memory_space<vmem>>, %arg3: memref<1x128xf32, #tpu.memory_space<vmem>>, %arg4: memref<128x128xf32, #tpu.memory_space<vmem>>, %arg5: memref<8x128xf32, #tpu.memory_space<vmem>>, %arg6: memref<64x128xf32, #tpu.memory_space<vmem>>, %arg7: memref<8x128xf32, #tpu.memory_space<vmem>>, %arg8: memref<64x128xf32, #tpu.memory_space<vmem>>) attributes {dimension_semantics = [#tpu.dimension_semantics<arbitrary>], iteration_bounds = array<i64: 1>, scalar_prefetch = 0 : i64, scratch_operands = 2 : i64, tpu.core_type = #tpu.core_type<tc>, window_params = [{transform_indices = @transform_0, window_bounds = array<i64: 64, 128>}, {pipeline_mode = #tpu.pipeline_mode<synchronous>, transform_indices = @transform_1, window_bounds = array<i64: 128, 128>}, {pipeline_mode = #tpu.pipeline_mode<synchronous>, transform_indices = @transform_2, window_bounds = array<i64: 1, 128>}, {pipeline_mode = #tpu.pipeline_mode<synchronous>, transform_indices = @transform_3, window_bounds = array<i64: 128, 128>}, {pipeline_mode = #tpu.pipeline_mode<synchronous>, transform_indices = @transform_4, window_bounds = array<i64: 8, 128>}, {transform_indices = @transform_5, window_bounds = array<i64: 64, 128>}]} {
    %c0_i32 = arith.constant 0 : i32
    %0 = arith.cmpi eq, %arg0, %c0_i32 : i32
    %1 = arith.extui %0 : i1 to i32
    %c0_i32_0 = arith.constant 0 : i32
    %2 = arith.cmpi ne, %1, %c0_i32_0 : i32
    scf.if %2 {
      %c0_47 = arith.constant 0 : index
      %c0_48 = arith.constant 0 : index
      %53 = vector.load %arg5[%c0_47, %c0_48] : memref<8x128xf32, #tpu.memory_space<vmem>>, vector<8x128xf32>
      %c0_49 = arith.constant 0 : index
      %c0_50 = arith.constant 0 : index
      %54 = vector.load %arg7[%c0_49, %c0_50] : memref<8x128xf32, #tpu.memory_space<vmem>>, vector<8x128xf32>
      tpu.vector_store %arg7[%c0_49, %c0_50], %53 {strides = array<i32>} : memref<8x128xf32, #tpu.memory_space<vmem>>, vector<8x128xf32>,
    } else {
    }
    %c0 = arith.constant 0 : index
    %c0_1 = arith.constant 0 : index
    %3 = vector.load %arg1[%c0, %c0_1] : memref<64x128xf32, #tpu.memory_space<vmem>>, vector<64x128xf32>
    %c0_2 = arith.constant 0 : index
    %c0_3 = arith.constant 0 : index
    %4 = vector.load %arg2[%c0_2, %c0_3] : memref<128x128xf32, #tpu.memory_space<vmem>>, vector<128x128xf32>
    %cst = arith.constant dense<0.000000e+00> : vector<64x128xf32>
    %5 = tpu.matmul %3, %4, %cst {dimension_numbers = #tpu.dot_dimension_numbers<[1], [0], [0], [1], [0, 0, 1, 1], [], []>} : vector<64x128xf32>, vector<128x128xf32>, vector<64x128xf32> -> vector<64x128xf32>
    %c0_4 = arith.constant 0 : index
    %c0_5 = arith.constant 0 : index
    %6 = vector.load %arg3[%c0_4, %c0_5] : memref<1x128xf32, #tpu.memory_space<vmem>>, vector<1x128xf32>
    %7 = vector.broadcast %6 : vector<1x128xf32> to vector<64x128xf32>
    %8 = arith.addf %5, %7 : vector<64x128xf32>
    %c0_6 = arith.constant 0 : index
    %c0_7 = arith.constant 0 : index
    %9 = vector.load %arg8[%c0_6, %c0_7] : memref<64x128xf32, #tpu.memory_space<vmem>>, vector<64x128xf32>
    tpu.vector_store %arg8[%c0_6, %c0_7], %8 {strides = array<i32>} : memref<64x128xf32, #tpu.memory_space<vmem>>, vector<64x128xf32>,
    %c0_8 = arith.constant 0 : index
    %c0_9 = arith.constant 0 : index
    %10 = vector.load %arg4[%c0_8, %c0_9] : memref<128x128xf32, #tpu.memory_space<vmem>>, vector<128x128xf32>
    %c0_10 = arith.constant 0 : index
    %c0_11 = arith.constant 0 : index
    %11 = vector.load %arg7[%c0_10, %c0_11] : memref<8x128xf32, #tpu.memory_space<vmem>>, vector<8x128xf32>
    %c0_12 = arith.constant 0 : index
    %c0_13 = arith.constant 0 : index
    %12 = vector.load %arg8[%c0_12, %c0_13] : memref<64x128xf32, #tpu.memory_space<vmem>>, vector<8x128xf32>
    %cst_14 = arith.constant dense<0.000000e+00> : vector<8x128xf32>
    %13 = tpu.matmul %11, %10, %cst_14 {dimension_numbers = #tpu.dot_dimension_numbers<[1], [0], [0], [1], [0, 0, 1, 1], [], []>} : vector<8x128xf32>, vector<128x128xf32>, vector<8x128xf32> -> vector<8x128xf32>
    %14 = arith.addf %12, %13 : vector<8x128xf32>
    %15 = math.tanh %14 : vector<8x128xf32>
    %c0_15 = arith.constant 0 : index
    %c0_16 = arith.constant 0 : index
    %16 = vector.load %arg6[%c0_15, %c0_16] : memref<64x128xf32, #tpu.memory_space<vmem>>, vector<8x128xf32>
    tpu.vector_store %arg6[%c0_15, %c0_16], %15 {strides = array<i32>} : memref<64x128xf32, #tpu.memory_space<vmem>>, vector<8x128xf32>,
    %c8 = arith.constant 8 : index
    %c0_17 = arith.constant 0 : index
    %17 = vector.load %arg8[%c8, %c0_17] : memref<64x128xf32, #tpu.memory_space<vmem>>, vector<8x128xf32>
    %cst_18 = arith.constant dense<0.000000e+00> : vector<8x128xf32>
    %18 = tpu.matmul %15, %10, %cst_18 {dimension_numbers = #tpu.dot_dimension_numbers<[1], [0], [0], [1], [0, 0, 1, 1], [], []>} : vector<8x128xf32>, vector<128x128xf32>, vector<8x128xf32> -> vector<8x128xf32>
    %19 = arith.addf %17, %18 : vector<8x128xf32>
    %20 = math.tanh %19 : vector<8x128xf32>
    %c8_19 = arith.constant 8 : index
    %c0_20 = arith.constant 0 : index
    %21 = vector.load %arg6[%c8_19, %c0_20] : memref<64x128xf32, #tpu.memory_space<vmem>>, vector<8x128xf32>
    tpu.vector_store %arg6[%c8_19, %c0_20], %20 {strides = array<i32>} : memref<64x128xf32, #tpu.memory_space<vmem>>, vector<8x128xf32>,
    %c16 = arith.constant 16 : index
    %c0_21 = arith.constant 0 : index
    %22 = vector.load %arg8[%c16, %c0_21] : memref<64x128xf32, #tpu.memory_space<vmem>>, vector<8x128xf32>
    %cst_22 = arith.constant dense<0.000000e+00> : vector<8x128xf32>
    %23 = tpu.matmul %20, %10, %cst_22 {dimension_numbers = #tpu.dot_dimension_numbers<[1], [0], [0], [1], [0, 0, 1, 1], [], []>} : vector<8x128xf32>, vector<128x128xf32>, vector<8x128xf32> -> vector<8x128xf32>
    %24 = arith.addf %22, %23 : vector<8x128xf32>
    %25 = math.tanh %24 : vector<8x128xf32>
    %c16_23 = arith.constant 16 : index
    %c0_24 = arith.constant 0 : index
    %26 = vector.load %arg6[%c16_23, %c0_24] : memref<64x128xf32, #tpu.memory_space<vmem>>, vector<8x128xf32>
    tpu.vector_store %arg6[%c16_23, %c0_24], %25 {strides = array<i32>} : memref<64x128xf32, #tpu.memory_space<vmem>>, vector<8x128xf32>,
    %c24 = arith.constant 24 : index
    %c0_25 = arith.constant 0 : index
    %27 = vector.load %arg8[%c24, %c0_25] : memref<64x128xf32, #tpu.memory_space<vmem>>, vector<8x128xf32>
    %cst_26 = arith.constant dense<0.000000e+00> : vector<8x128xf32>
    %28 = tpu.matmul %25, %10, %cst_26 {dimension_numbers = #tpu.dot_dimension_numbers<[1], [0], [0], [1], [0, 0, 1, 1], [], []>} : vector<8x128xf32>, vector<128x128xf32>, vector<8x128xf32> -> vector<8x128xf32>
    %29 = arith.addf %27, %28 : vector<8x128xf32>
    %30 = math.tanh %29 : vector<8x128xf32>
    %c24_27 = arith.constant 24 : index
    %c0_28 = arith.constant 0 : index
    %31 = vector.load %arg6[%c24_27, %c0_28] : memref<64x128xf32, #tpu.memory_space<vmem>>, vector<8x128xf32>
    tpu.vector_store %arg6[%c24_27, %c0_28], %30 {strides = array<i32>} : memref<64x128xf32, #tpu.memory_space<vmem>>, vector<8x128xf32>,
    %c32 = arith.constant 32 : index
    %c0_29 = arith.constant 0 : index
    %32 = vector.load %arg8[%c32, %c0_29] : memref<64x128xf32, #tpu.memory_space<vmem>>, vector<8x128xf32>
    %cst_30 = arith.constant dense<0.000000e+00> : vector<8x128xf32>
    %33 = tpu.matmul %30, %10, %cst_30 {dimension_numbers = #tpu.dot_dimension_numbers<[1], [0], [0], [1], [0, 0, 1, 1], [], []>} : vector<8x128xf32>, vector<128x128xf32>, vector<8x128xf32> -> vector<8x128xf32>
    %34 = arith.addf %32, %33 : vector<8x128xf32>
    %35 = math.tanh %34 : vector<8x128xf32>
    %c32_31 = arith.constant 32 : index
    %c0_32 = arith.constant 0 : index
    %36 = vector.load %arg6[%c32_31, %c0_32] : memref<64x128xf32, #tpu.memory_space<vmem>>, vector<8x128xf32>
    tpu.vector_store %arg6[%c32_31, %c0_32], %35 {strides = array<i32>} : memref<64x128xf32, #tpu.memory_space<vmem>>, vector<8x128xf32>,
    %c40 = arith.constant 40 : index
    %c0_33 = arith.constant 0 : index
    %37 = vector.load %arg8[%c40, %c0_33] : memref<64x128xf32, #tpu.memory_space<vmem>>, vector<8x128xf32>
    %cst_34 = arith.constant dense<0.000000e+00> : vector<8x128xf32>
    %38 = tpu.matmul %35, %10, %cst_34 {dimension_numbers = #tpu.dot_dimension_numbers<[1], [0], [0], [1], [0, 0, 1, 1], [], []>} : vector<8x128xf32>, vector<128x128xf32>, vector<8x128xf32> -> vector<8x128xf32>
    %39 = arith.addf %37, %38 : vector<8x128xf32>
    %40 = math.tanh %39 : vector<8x128xf32>
    %c40_35 = arith.constant 40 : index
    %c0_36 = arith.constant 0 : index
    %41 = vector.load %arg6[%c40_35, %c0_36] : memref<64x128xf32, #tpu.memory_space<vmem>>, vector<8x128xf32>
    tpu.vector_store %arg6[%c40_35, %c0_36], %40 {strides = array<i32>} : memref<64x128xf32, #tpu.memory_space<vmem>>, vector<8x128xf32>,
    %c48 = arith.constant 48 : index
    %c0_37 = arith.constant 0 : index
    %42 = vector.load %arg8[%c48, %c0_37] : memref<64x128xf32, #tpu.memory_space<vmem>>, vector<8x128xf32>
    %cst_38 = arith.constant dense<0.000000e+00> : vector<8x128xf32>
    %43 = tpu.matmul %40, %10, %cst_38 {dimension_numbers = #tpu.dot_dimension_numbers<[1], [0], [0], [1], [0, 0, 1, 1], [], []>} : vector<8x128xf32>, vector<128x128xf32>, vector<8x128xf32> -> vector<8x128xf32>
    %44 = arith.addf %42, %43 : vector<8x128xf32>
    %45 = math.tanh %44 : vector<8x128xf32>
    %c48_39 = arith.constant 48 : index
    %c0_40 = arith.constant 0 : index
    %46 = vector.load %arg6[%c48_39, %c0_40] : memref<64x128xf32, #tpu.memory_space<vmem>>, vector<8x128xf32>
    tpu.vector_store %arg6[%c48_39, %c0_40], %45 {strides = array<i32>} : memref<64x128xf32, #tpu.memory_space<vmem>>, vector<8x128xf32>,
    %c56 = arith.constant 56 : index
    %c0_41 = arith.constant 0 : index
    %47 = vector.load %arg8[%c56, %c0_41] : memref<64x128xf32, #tpu.memory_space<vmem>>, vector<8x128xf32>
    %cst_42 = arith.constant dense<0.000000e+00> : vector<8x128xf32>
    %48 = tpu.matmul %45, %10, %cst_42 {dimension_numbers = #tpu.dot_dimension_numbers<[1], [0], [0], [1], [0, 0, 1, 1], [], []>} : vector<8x128xf32>, vector<128x128xf32>, vector<8x128xf32> -> vector<8x128xf32>
    %49 = arith.addf %47, %48 : vector<8x128xf32>
    %50 = math.tanh %49 : vector<8x128xf32>
    %c56_43 = arith.constant 56 : index
    %c0_44 = arith.constant 0 : index
    %51 = vector.load %arg6[%c56_43, %c0_44] : memref<64x128xf32, #tpu.memory_space<vmem>>, vector<8x128xf32>
    tpu.vector_store %arg6[%c56_43, %c0_44], %50 {strides = array<i32>} : memref<64x128xf32, #tpu.memory_space<vmem>>, vector<8x128xf32>,
    %c0_45 = arith.constant 0 : index
    %c0_46 = arith.constant 0 : index
    %52 = vector.load %arg7[%c0_45, %c0_46] : memref<8x128xf32, #tpu.memory_space<vmem>>, vector<8x128xf32>
    tpu.vector_store %arg7[%c0_45, %c0_46], %50 {strides = array<i32>} : memref<8x128xf32, #tpu.memory_space<vmem>>, vector<8x128xf32>,
    return
  }
  func.func @transform_0(%arg0: i32) -> (i32, i32) {
    %c0_i32 = arith.constant 0 : i32
    %c0_i32_0 = arith.constant 0 : i32
    return %arg0, %c0_i32 : i32, i32
  }
  func.func @transform_1(%arg0: i32) -> (i32, i32) {
    %c0_i32 = arith.constant 0 : i32
    %c0_i32_0 = arith.constant 0 : i32
    %c0_i32_1 = arith.constant 0 : i32
    return %c0_i32, %c0_i32_0 : i32, i32
  }
  func.func @transform_2(%arg0: i32) -> (i32, i32) {
    %c0_i32 = arith.constant 0 : i32
    %c0_i32_0 = arith.constant 0 : i32
    %c0_i32_1 = arith.constant 0 : i32
    return %c0_i32, %c0_i32_0 : i32, i32
  }
  func.func @transform_3(%arg0: i32) -> (i32, i32) {
    %c0_i32 = arith.constant 0 : i32
    %c0_i32_0 = arith.constant 0 : i32
    %c0_i32_1 = arith.constant 0 : i32
    return %c0_i32, %c0_i32_0 : i32, i32
  }
  func.func @transform_4(%arg0: i32) -> (i32, i32) {
    %c0_i32 = arith.constant 0 : i32
    %c0_i32_0 = arith.constant 0 : i32
    %c0_i32_1 = arith.constant 0 : i32
    return %c0_i32, %c0_i32_0 : i32, i32
  }
  func.func @transform_5(%arg0: i32) -> (i32, i32) {
    %c0_i32 = arith.constant 0 : i32
    %c0_i32_0 = arith.constant 0 : i32
    return %arg0, %c0_i32 : i32, i32
  }
}

</mosaic_0001>

<llo_original>
// kernel: tpu_custom_call.1
$region0: #{tpu_custom_call.1}
  #allocation0 [shape = 'u32[]', space=smem, size = 0x4, offset = 0x4, fixed_abs, tag = 'smem constant byte address 0x4 - core index']
  #allocation1 [shape = 'u32[144,128]{1,0:T(1,128)}', space=vmem, size = 0x12000, scoped, tag = 'internal scratch']
  #allocation2 [shape = 'f32[8,128]{1,0:T(8,128)}', space=vmem, size = 0x1000, scoped, tag = 'scratch operand']
  #allocation3 [shape = 'f32[64,128]{1,0:T(8,128)}', space=vmem, size = 0x8000, scoped, tag = 'scratch operand']
  %s0 = inlined_call_operand.hbm [shape: f32[64,128], index: 0, kind: input, shape index: {}]
  %s1 = inlined_call_operand.hbm [shape: f32[128,128], index: 1, kind: input, shape index: {}]
  %s2 = inlined_call_operand.vmem [shape: f32[1,128], index: 2, kind: input, shape index: {}]
  %s3 = inlined_call_operand.hbm [shape: f32[128,128], index: 3, kind: input, shape index: {}]
  %s4 = inlined_call_operand.vmem [shape: f32[8,128], index: 4, kind: input, shape index: {}]
  %s5 = inlined_call_operand.hbm [shape: f32[64,128], index: 5, kind: output, shape index: {}]
  %s6 = sld [smem:[#allocation0]]
  $region46: #{tpu_custom_call.1} parent=0
    _
  %s8 = ssub.s32 1, %s6
  %s9 = scalar_select 0, %s8, %s6
  $region1: #{tpu_custom_call.1} parent=0
    #allocation4 [shape = 'u8[32768]{0}', space=vmem, size = 0x8000, scoped, tag = 'input window, operand 0, single buffered']
    #allocation5 [shape = 's32[1]{0}', space=sflag, size = 0x4, scoped, tag = 'scoped memory for tpu_custom_call.1']
    #allocation6 [shape = 's32[1]{0}', space=sflag, size = 0x4, scoped, tag = 'scoped memory for tpu_custom_call.1']
    #allocation7 [shape = 'u8[65536]{0}', space=vmem, size = 0x10000, scoped, tag = 'input window, operand 1, single buffered']
    #allocation8 [shape = 's32[1]{0}', space=sflag, size = 0x4, scoped, tag = 'scoped memory for tpu_custom_call.1']
    #allocation9 [shape = 'u8[65536]{0}', space=vmem, size = 0x10000, scoped, tag = 'input window, operand 3, single buffered']
    #allocation10 [shape = 'u8[32768]{0}', space=vmem, size = 0x8000, scoped, tag = 'output window, operand 0, single buffered']
    %10 = vsyncpa [#allocation5], 0
    %11 = vsyncpa [#allocation8], 0
    %12 = vsyncpa [#allocation6], 0
    // Predicated region
    $region2: #{tpu_custom_call.1} parent=1 // pred_check
      _
    $region3: #{tpu_custom_call.1} parent=1 // pred_check_branch
      %14 = sbr.rel (0) target = $region5
    $region4: #{tpu_custom_call.1} parent=1 // pred_region
      %s16 = ssub.s32 1024, 1024
      %17 = vsyncadd [#allocation5], %s16
      %s18 = sshll.u32 [#allocation4], 4
      %s19 = int_to_ptr.vmem [resolvable:$true] %s18
      %24 = dma.hbm_to_vmem [thread:$0]  %s0, 1024, %s19, [#allocation5], 128, 128, 8
    $region5: #{tpu_custom_call.1} parent=1 // pred_fallthru
      _
    // Predicated region
    $region6: #{tpu_custom_call.1} parent=1 // pred_check
      _
    $region7: #{tpu_custom_call.1} parent=1 // pred_check_branch
      %26 = sbr.rel (0) target = $region9
    $region8: #{tpu_custom_call.1} parent=1 // pred_region
      %s28 = ssub.s32 2048, 2048
      %29 = vsyncadd [#allocation8], %s28
      %s30 = sshll.u32 [#allocation7], 4
      %s31 = int_to_ptr.vmem [resolvable:$true] %s30
      %36 = dma.hbm_to_vmem [thread:$0]  %s1, 2048, %s31, [#allocation8], 128, 128, 8
    $region9: #{tpu_custom_call.1} parent=1 // pred_fallthru
      _
    // Predicated region
    $region10: #{tpu_custom_call.1} parent=1 // pred_check
      _
    $region11: #{tpu_custom_call.1} parent=1 // pred_check_branch
      %38 = sbr.rel (0) target = $region13
    $region12: #{tpu_custom_call.1} parent=1 // pred_region
      _
    $region13: #{tpu_custom_call.1} parent=1 // pred_fallthru
      _
    // Predicated region
    $region14: #{tpu_custom_call.1} parent=1 // pred_check
      _
    $region15: #{tpu_custom_call.1} parent=1 // pred_check_branch
      %40 = sbr.rel (0) target = $region17
    $region16: #{tpu_custom_call.1} parent=1 // pred_region
      %s42 = ssub.s32 2048, 2048
      %43 = vsyncadd [#allocation8], %s42
      %s44 = sshll.u32 [#allocation9], 4
      %s45 = int_to_ptr.vmem [resolvable:$true] %s44
      %50 = dma.hbm_to_vmem [thread:$0]  %s3, 2048, %s45, [#allocation8], 128, 128, 8
    $region17: #{tpu_custom_call.1} parent=1 // pred_fallthru
      _
    // Predicated region
    $region18: #{tpu_custom_call.1} parent=1 // pred_check
      _
    $region19: #{tpu_custom_call.1} parent=1 // pred_check_branch
      %52 = sbr.rel (0) target = $region21
    $region20: #{tpu_custom_call.1} parent=1 // pred_region
      _
    $region21: #{tpu_custom_call.1} parent=1 // pred_fallthru
      _
    // Predicated region
    $region22: #{tpu_custom_call.1} parent=1 // pred_check
      _
    $region23: #{tpu_custom_call.1} parent=1 // pred_check_branch
      %54 = sbr.rel (0) target = $region25
    $region24: #{tpu_custom_call.1} parent=1 // pred_region
      %55 = dma.done [#allocation5], 1024
    $region25: #{tpu_custom_call.1} parent=1 // pred_fallthru
      _
    // Predicated region
    $region26: #{tpu_custom_call.1} parent=1 // pred_check
      _
    $region27: #{tpu_custom_call.1} parent=1 // pred_check_branch
      %57 = sbr.rel (0) target = $region29
    $region28: #{tpu_custom_call.1} parent=1 // pred_region
      %58 = dma.done [#allocation8], 2048
    $region29: #{tpu_custom_call.1} parent=1 // pred_fallthru
      _
    // Predicated region
    $region30: #{tpu_custom_call.1} parent=1 // pred_check
      _
    $region31: #{tpu_custom_call.1} parent=1 // pred_check_branch
      %60 = sbr.rel (0) target = $region33
    $region32: #{tpu_custom_call.1} parent=1 // pred_region
      %61 = dma.done [#allocation8], 2048
    $region33: #{tpu_custom_call.1} parent=1 // pred_fallthru
      _
    %p62 = scmp.eq.s32.totalorder 0, 0
    // Predicated region
    $region34: #{tpu_custom_call.1} parent=1 // pred_check
      %p63 = pneg %p62
    $region35: #{tpu_custom_call.1} parent=1 // pred_check_branch
      %65 = sbr.rel (%p63) target = $region37
    $region36: #{tpu_custom_call.1} parent=1 // pred_region
      %v66 = vld [vmem:[%s4] sm:$0xff]
      %67 = vst [vmem:[#allocation2] sm:$0xff] %v66
    $region37: #{tpu_custom_call.1} parent=1 // pred_fallthru
      _
    %v68 = vld [vmem:[#allocation4] sm:$0xff]
    %v69 = vld [vmem:[#allocation4 + $0x8] sm:$0xff]
    %v70 = vld [vmem:[#allocation4 + $0x10] sm:$0xff]
    %v71 = vld [vmem:[#allocation4 + $0x18] sm:$0xff]
    %v72 = vld [vmem:[#allocation4 + $0x20] sm:$0xff]
    %v73 = vld [vmem:[#allocation4 + $0x28] sm:$0xff]
    %v74 = vld [vmem:[#allocation4 + $0x30] sm:$0xff]
    %v75 = vld [vmem:[#allocation4 + $0x38] sm:$0xff]
    %v76 = vld [vmem:[#allocation7] sm:$0xff]
    %v77 = vld [vmem:[#allocation7 + $0x8] sm:$0xff]
    %v78 = vld [vmem:[#allocation7 + $0x10] sm:$0xff]
    %v79 = vld [vmem:[#allocation7 + $0x18] sm:$0xff]
    %v80 = vld [vmem:[#allocation7 + $0x20] sm:$0xff]
    %v81 = vld [vmem:[#allocation7 + $0x28] sm:$0xff]
    %v82 = vld [vmem:[#allocation7 + $0x30] sm:$0xff]
    %v83 = vld [vmem:[#allocation7 + $0x38] sm:$0xff]
    %v84 = vld [vmem:[#allocation7 + $0x40] sm:$0xff]
    %v85 = vld [vmem:[#allocation7 + $0x48] sm:$0xff]
    %v86 = vld [vmem:[#allocation7 + $0x50] sm:$0xff]
    %v87 = vld [vmem:[#allocation7 + $0x58] sm:$0xff]
    %v88 = vld [vmem:[#allocation7 + $0x60] sm:$0xff]
    %v89 = vld [vmem:[#allocation7 + $0x68] sm:$0xff]
    %v90 = vld [vmem:[#allocation7 + $0x70] sm:$0xff]
    %v91 = vld [vmem:[#allocation7 + $0x78] sm:$0xff]
    %v92 = vld [vmem:[%s2] sm:$0x1]
    %v94 = vlaneseq
    %v95 = vshrl.u32 %v94, 7
    %v96 = vsub.s32 0, %v95
    %v97 = vrot.slane %v92, %v96
    %99 = vmatprep.subr.mxu0 0.0
    %100 = vmatpush1.msra.mxu0 %v76
    %101 = vmatprep.subr.mxu0 0.0
    %102 = vmatpush1.msra.mxu0 %v77
    %103 = vmatprep.subr.mxu0 0.0
    %104 = vmatpush1.msra.mxu0 %v78
    %105 = vmatprep.subr.mxu0 0.0
    %106 = vmatpush1.msra.mxu0 %v79
    %107 = vmatprep.subr.mxu0 0.0
    %108 = vmatpush1.msra.mxu0 %v80
    %109 = vmatprep.subr.mxu0 0.0
    %110 = vmatpush1.msra.mxu0 %v81
    %111 = vmatprep.subr.mxu0 0.0
    %112 = vmatpush1.msra.mxu0 %v82
    %113 = vmatprep.subr.mxu0 0.0
    %114 = vmatpush1.msra.mxu0 %v83
    %115 = vmatprep.subr.mxu0 0.0
    %116 = vmatpush1.msra.mxu0 %v84
    %117 = vmatprep.subr.mxu0 0.0
    %118 = vmatpush1.msra.mxu0 %v85
    %119 = vmatprep.subr.mxu0 0.0
    %120 = vmatpush1.msra.mxu0 %v86
    %121 = vmatprep.subr.mxu0 0.0
    %122 = vmatpush1.msra.mxu0 %v87
    %123 = vmatprep.subr.mxu0 0.0
    %124 = vmatpush1.msra.mxu0 %v88
    %125 = vmatprep.subr.mxu0 0.0
    %126 = vmatpush1.msra.mxu0 %v89
    %127 = vmatprep.subr.mxu0 0.0
    %128 = vmatpush1.msra.mxu0 %v90
    %129 = vmatprep.subr.mxu0 0.0
    %130 = vmatpush1.msra.mxu0 %v91
    %131 = vmatprep.subr.mxu0 0.0
    %132 = vmatpush1.msra.mxu0 0.0
    %133 = vmatprep.subr.mxu0 0.0
    %134 = vmatpush1.msra.mxu0 0.0
    %135 = vmatprep.subr.mxu0 0.0
    %136 = vmatpush1.msra.mxu0 0.0
    %137 = vmatprep.subr.mxu0 0.0
    %138 = vmatpush1.msra.mxu0 0.0
    %139 = vmatprep.subr.mxu0 0.0
    %140 = vmatpush1.msra.mxu0 0.0
    %141 = vmatprep.subr.mxu0 0.0
    %142 = vmatpush1.msra.mxu0 0.0
    %143 = vmatprep.subr.mxu0 0.0
    %144 = vmatpush1.msra.mxu0 0.0
    %145 = vmatprep.subr.mxu0 0.0
    %146 = vmatpush1.msra.mxu0 0.0
    %147 = vmatprep.subr.mxu0 0.0
    %148 = vmatpush1.msra.mxu0 0.0
    %149 = vmatprep.subr.mxu0 0.0
    %150 = vmatpush1.msra.mxu0 0.0
    %151 = vmatprep.subr.mxu0 0.0
    %152 = vmatpush1.msra.mxu0 0.0
    %153 = vmatprep.subr.mxu0 0.0
    %154 = vmatpush1.msra.mxu0 0.0
    %155 = vmatprep.subr.mxu0 0.0
    %156 = vmatpush1.msra.mxu0 0.0
    %157 = vmatprep.subr.mxu0 0.0
    %158 = vmatpush1.msra.mxu0 0.0
    %159 = vmatprep.subr.mxu0 0.0
    %160 = vmatpush1.msra.mxu0 0.0
    %161 = vmatprep.subr.mxu0 0.0
    %162 = vmatpush1.msra.mxu0 0.0
    %163 = vmatprep.mubr.f32.mxu0 0.0
    %164 = vmatmul.mubr.f32.gmra.mrb[0].mxu0 %v68
    %v165 = vpop.f32.mrb[0].mxu0
    %v166 = vadd.f32 %v97, %v165
    %v167 = vpop.f32.mrb[0].mxu0
    %168 = vmatprep.mubr.f32.mxu0 0.0
    %169 = vmatmul.mubr.f32.gmra.mrb[0].mxu0 %v69
    %v170 = vpop.f32.mrb[0].mxu0
    %v171 = vadd.f32 %v97, %v170
    %v172 = vpop.f32.mrb[0].mxu0
    %173 = vmatprep.mubr.f32.mxu0 0.0
    %174 = vmatmul.mubr.f32.gmra.mrb[0].mxu0 %v70
    %v175 = vpop.f32.mrb[0].mxu0
    %v176 = vadd.f32 %v97, %v175
    %v177 = vpop.f32.mrb[0].mxu0
    %178 = vmatprep.mubr.f32.mxu0 0.0
    %179 = vmatmul.mubr.f32.gmra.mrb[0].mxu0 %v71
    %v180 = vpop.f32.mrb[0].mxu0
    %v181 = vadd.f32 %v97, %v180
    %v182 = vpop.f32.mrb[0].mxu0
    %183 = vmatprep.mubr.f32.mxu0 0.0
    %184 = vmatmul.mubr.f32.gmra.mrb[0].mxu0 %v72
    %v185 = vpop.f32.mrb[0].mxu0
    %v186 = vadd.f32 %v97, %v185
    %v187 = vpop.f32.mrb[0].mxu0
    %188 = vmatprep.mubr.f32.mxu0 0.0
    %189 = vmatmul.mubr.f32.gmra.mrb[0].mxu0 %v73
    %v190 = vpop.f32.mrb[0].mxu0
    %v191 = vadd.f32 %v97, %v190
    %v192 = vpop.f32.mrb[0].mxu0
    %193 = vmatprep.mubr.f32.mxu0 0.0
    %194 = vmatmul.mubr.f32.gmra.mrb[0].mxu0 %v74
    %v195 = vpop.f32.mrb[0].mxu0
    %v196 = vadd.f32 %v97, %v195
    %v197 = vpop.f32.mrb[0].mxu0
    %198 = vmatprep.mubr.f32.mxu0 0.0
    %199 = vmatmul.mubr.f32.gmra.mrb[0].mxu0 %v75
    %v200 = vpop.f32.mrb[0].mxu0
    %v201 = vadd.f32 %v97, %v200
    %v202 = vpop.f32.mrb[0].mxu0
    %203 = vdwg.mxu0
    %204 = vst [vmem:[#allocation3] sm:$0xff] %v166
    %205 = vst [vmem:[#allocation3 + $0x8] sm:$0xff] %v171
    %206 = vst [vmem:[#allocation3 + $0x10] sm:$0xff] %v176
    %207 = vst [vmem:[#allocation3 + $0x18] sm:$0xff] %v181
    %208 = vst [vmem:[#allocation3 + $0x20] sm:$0xff] %v186
    %209 = vst [vmem:[#allocation3 + $0x28] sm:$0xff] %v191
    %210 = vst [vmem:[#allocation3 + $0x30] sm:$0xff] %v196
    %211 = vst [vmem:[#allocation3 + $0x38] sm:$0xff] %v201
    %v212 = vld [vmem:[#allocation9] sm:$0xff]
    %v213 = vld [vmem:[#allocation9 + $0x8] sm:$0xff]
    %v214 = vld [vmem:[#allocation9 + $0x10] sm:$0xff]
    %v215 = vld [vmem:[#allocation9 + $0x18] sm:$0xff]
    %v216 = vld [vmem:[#allocation9 + $0x20] sm:$0xff]
    %v217 = vld [vmem:[#allocation9 + $0x28] sm:$0xff]
    %v218 = vld [vmem:[#allocation9 + $0x30] sm:$0xff]
    %v219 = vld [vmem:[#allocation9 + $0x38] sm:$0xff]
    %v220 = vld [vmem:[#allocation9 + $0x40] sm:$0xff]
    %v221 = vld [vmem:[#allocation9 + $0x48] sm:$0xff]
    %v222 = vld [vmem:[#allocation9 + $0x50] sm:$0xff]
    %v223 = vld [vmem:[#allocation9 + $0x58] sm:$0xff]
    %v224 = vld [vmem:[#allocation9 + $0x60] sm:$0xff]
    %v225 = vld [vmem:[#allocation9 + $0x68] sm:$0xff]
    %v226 = vld [vmem:[#allocation9 + $0x70] sm:$0xff]
    %v227 = vld [vmem:[#allocation9 + $0x78] sm:$0xff]
    %v228 = vld [vmem:[#allocation2] sm:$0xff]
    %v229 = vld [vmem:[#allocation3] sm:$0xff]
    %230 = vmatprep.subr.mxu0 0.0
    %231 = vmatpush1.msra.mxu0 %v212
    %232 = vmatprep.subr.mxu0 0.0
    %233 = vmatpush1.msra.mxu0 %v213
    %234 = vmatprep.subr.mxu0 0.0
    %235 = vmatpush1.msra.mxu0 %v214
    %236 = vmatprep.subr.mxu0 0.0
    %237 = vmatpush1.msra.mxu0 %v215
    %238 = vmatprep.subr.mxu0 0.0
    %239 = vmatpush1.msra.mxu0 %v216
    %240 = vmatprep.subr.mxu0 0.0
    %241 = vmatpush1.msra.mxu0 %v217
    %242 = vmatprep.subr.mxu0 0.0
    %243 = vmatpush1.msra.mxu0 %v218
    %244 = vmatprep.subr.mxu0 0.0
    %245 = vmatpush1.msra.mxu0 %v219
    %246 = vmatprep.subr.mxu0 0.0
    %247 = vmatpush1.msra.mxu0 %v220
    %248 = vmatprep.subr.mxu0 0.0
    %249 = vmatpush1.msra.mxu0 %v221
    %250 = vmatprep.subr.mxu0 0.0
    %251 = vmatpush1.msra.mxu0 %v222
    %252 = vmatprep.subr.mxu0 0.0
    %253 = vmatpush1.msra.mxu0 %v223
    %254 = vmatprep.subr.mxu0 0.0
    %255 = vmatpush1.msra.mxu0 %v224
    %256 = vmatprep.subr.mxu0 0.0
    %257 = vmatpush1.msra.mxu0 %v225
    %258 = vmatprep.subr.mxu0 0.0
    %259 = vmatpush1.msra.mxu0 %v226
    %260 = vmatprep.subr.mxu0 0.0
    %261 = vmatpush1.msra.mxu0 %v227
    %262 = vmatprep.subr.mxu0 0.0
    %263 = vmatpush1.msra.mxu0 0.0
    %264 = vmatprep.subr.mxu0 0.0
    %265 = vmatpush1.msra.mxu0 0.0
    %266 = vmatprep.subr.mxu0 0.0
    %267 = vmatpush1.msra.mxu0 0.0
    %268 = vmatprep.subr.mxu0 0.0
    %269 = vmatpush1.msra.mxu0 0.0
    %270 = vmatprep.subr.mxu0 0.0
    %271 = vmatpush1.msra.mxu0 0.0
    %272 = vmatprep.subr.mxu0 0.0
    %273 = vmatpush1.msra.mxu0 0.0
    %274 = vmatprep.subr.mxu0 0.0
    %275 = vmatpush1.msra.mxu0 0.0
    %276 = vmatprep.subr.mxu0 0.0
    %277 = vmatpush1.msra.mxu0 0.0
    %278 = vmatprep.subr.mxu0 0.0
    %279 = vmatpush1.msra.mxu0 0.0
    %280 = vmatprep.subr.mxu0 0.0
    %281 = vmatpush1.msra.mxu0 0.0
    %282 = vmatprep.subr.mxu0 0.0
    %283 = vmatpush1.msra.mxu0 0.0
    %284 = vmatprep.subr.mxu0 0.0
    %285 = vmatpush1.msra.mxu0 0.0
    %286 = vmatprep.subr.mxu0 0.0
    %287 = vmatpush1.msra.mxu0 0.0
    %288 = vmatprep.subr.mxu0 0.0
    %289 = vmatpush1.msra.mxu0 0.0
    %290 = vmatprep.subr.mxu0 0.0
    %291 = vmatpush1.msra.mxu0 0.0
    %292 = vmatprep.subr.mxu0 0.0
    %293 = vmatpush1.msra.mxu0 0.0
    %294 = vmatprep.mubr.f32.mxu0 0.0
    %295 = vmatmul.mubr.f32.gmra.mrb[0].mxu0 %v228
    %v296 = vpop.f32.mrb[0].mxu0
    %v297 = vadd.f32 0.0, %v296
    %v298 = vpop.f32.mrb[0].mxu0
    %299 = vdwg.mxu0
    %v300 = vadd.f32 %v229, %v297
    %v301 = vtanh.pop %v300
    %302 = vst [vmem:[#allocation10] sm:$0xff] %v301
    %v303 = vld [vmem:[#allocation3 + $0x8] sm:$0xff]
    %304 = vmatprep.subr.mxu0 0.0
    %305 = vmatpush1.msra.mxu0 %v212
    %306 = vmatprep.subr.mxu0 0.0
    %307 = vmatpush1.msra.mxu0 %v213
    %308 = vmatprep.subr.mxu0 0.0
    %309 = vmatpush1.msra.mxu0 %v214
    %310 = vmatprep.subr.mxu0 0.0
    %311 = vmatpush1.msra.mxu0 %v215
    %312 = vmatprep.subr.mxu0 0.0
    %313 = vmatpush1.msra.mxu0 %v216
    %314 = vmatprep.subr.mxu0 0.0
    %315 = vmatpush1.msra.mxu0 %v217
    %316 = vmatprep.subr.mxu0 0.0
    %317 = vmatpush1.msra.mxu0 %v218
    %318 = vmatprep.subr.mxu0 0.0
    %319 = vmatpush1.msra.mxu0 %v219
    %320 = vmatprep.subr.mxu0 0.0
    %321 = vmatpush1.msra.mxu0 %v220
    %322 = vmatprep.subr.mxu0 0.0
    %323 = vmatpush1.msra.mxu0 %v221
    %324 = vmatprep.subr.mxu0 0.0
    %325 = vmatpush1.msra.mxu0 %v222
    %326 = vmatprep.subr.mxu0 0.0
    %327 = vmatpush1.msra.mxu0 %v223
    %328 = vmatprep.subr.mxu0 0.0
    %329 = vmatpush1.msra.mxu0 %v224
    %330 = vmatprep.subr.mxu0 0.0
    %331 = vmatpush1.msra.mxu0 %v225
    %332 = vmatprep.subr.mxu0 0.0
    %333 = vmatpush1.msra.mxu0 %v226
    %334 = vmatprep.subr.mxu0 0.0
    %335 = vmatpush1.msra.mxu0 %v227
    %336 = vmatprep.subr.mxu0 0.0
    %337 = vmatpush1.msra.mxu0 0.0
    %338 = vmatprep.subr.mxu0 0.0
    %339 = vmatpush1.msra.mxu0 0.0
    %340 = vmatprep.subr.mxu0 0.0
    %341 = vmatpush1.msra.mxu0 0.0
    %342 = vmatprep.subr.mxu0 0.0
    %343 = vmatpush1.msra.mxu0 0.0
    %344 = vmatprep.subr.mxu0 0.0
    %345 = vmatpush1.msra.mxu0 0.0
    %346 = vmatprep.subr.mxu0 0.0
    %347 = vmatpush1.msra.mxu0 0.0
    %348 = vmatprep.subr.mxu0 0.0
    %349 = vmatpush1.msra.mxu0 0.0
    %350 = vmatprep.subr.mxu0 0.0
    %351 = vmatpush1.msra.mxu0 0.0
    %352 = vmatprep.subr.mxu0 0.0
    %353 = vmatpush1.msra.mxu0 0.0
    %354 = vmatprep.subr.mxu0 0.0
    %355 = vmatpush1.msra.mxu0 0.0
    %356 = vmatprep.subr.mxu0 0.0
    %357 = vmatpush1.msra.mxu0 0.0
    %358 = vmatprep.subr.mxu0 0.0
    %359 = vmatpush1.msra.mxu0 0.0
    %360 = vmatprep.subr.mxu0 0.0
    %361 = vmatpush1.msra.mxu0 0.0
    %362 = vmatprep.subr.mxu0 0.0
    %363 = vmatpush1.msra.mxu0 0.0
    %364 = vmatprep.subr.mxu0 0.0
    %365 = vmatpush1.msra.mxu0 0.0
    %366 = vmatprep.subr.mxu0 0.0
    %367 = vmatpush1.msra.mxu0 0.0
    %368 = vmatprep.mubr.f32.mxu0 0.0
    %369 = vmatmul.mubr.f32.gmra.mrb[0].mxu0 %v301
    %v370 = vpop.f32.mrb[0].mxu0
    %v371 = vadd.f32 0.0, %v370
    %v372 = vpop.f32.mrb[0].mxu0
    %373 = vdwg.mxu0
    %v374 = vadd.f32 %v303, %v371
    %v375 = vtanh.pop %v374
    %376 = vst [vmem:[#allocation10 + $0x8] sm:$0xff] %v375
    %v377 = vld [vmem:[#allocation3 + $0x10] sm:$0xff]
    %378 = vmatprep.subr.mxu0 0.0
    %379 = vmatpush1.msra.mxu0 %v212
    %380 = vmatprep.subr.mxu0 0.0
    %381 = vmatpush1.msra.mxu0 %v213
    %382 = vmatprep.subr.mxu0 0.0
    %383 = vmatpush1.msra.mxu0 %v214
    %384 = vmatprep.subr.mxu0 0.0
    %385 = vmatpush1.msra.mxu0 %v215
    %386 = vmatprep.subr.mxu0 0.0
    %387 = vmatpush1.msra.mxu0 %v216
    %388 = vmatprep.subr.mxu0 0.0
    %389 = vmatpush1.msra.mxu0 %v217
    %390 = vmatprep.subr.mxu0 0.0
    %391 = vmatpush1.msra.mxu0 %v218
    %392 = vmatprep.subr.mxu0 0.0
    %393 = vmatpush1.msra.mxu0 %v219
    %394 = vmatprep.subr.mxu0 0.0
    %395 = vmatpush1.msra.mxu0 %v220
    %396 = vmatprep.subr.mxu0 0.0
    %397 = vmatpush1.msra.mxu0 %v221
    %398 = vmatprep.subr.mxu0 0.0
    %399 = vmatpush1.msra.mxu0 %v222
    %400 = vmatprep.subr.mxu0 0.0
    %401 = vmatpush1.msra.mxu0 %v223
    %402 = vmatprep.subr.mxu0 0.0
    %403 = vmatpush1.msra.mxu0 %v224
    %404 = vmatprep.subr.mxu0 0.0
    %405 = vmatpush1.msra.mxu0 %v225
    %406 = vmatprep.subr.mxu0 0.0
    %407 = vmatpush1.msra.mxu0 %v226
    %408 = vmatprep.subr.mxu0 0.0
    %409 = vmatpush1.msra.mxu0 %v227
    %410 = vmatprep.subr.mxu0 0.0
    %411 = vmatpush1.msra.mxu0 0.0
    %412 = vmatprep.subr.mxu0 0.0
    %413 = vmatpush1.msra.mxu0 0.0
    %414 = vmatprep.subr.mxu0 0.0
    %415 = vmatpush1.msra.mxu0 0.0
    %416 = vmatprep.subr.mxu0 0.0
    %417 = vmatpush1.msra.mxu0 0.0
    %418 = vmatprep.subr.mxu0 0.0
    %419 = vmatpush1.msra.mxu0 0.0
    %420 = vmatprep.subr.mxu0 0.0
    %421 = vmatpush1.msra.mxu0 0.0
    %422 = vmatprep.subr.mxu0 0.0
    %423 = vmatpush1.msra.mxu0 0.0
    %424 = vmatprep.subr.mxu0 0.0
    %425 = vmatpush1.msra.mxu0 0.0
    %426 = vmatprep.subr.mxu0 0.0
    %427 = vmatpush1.msra.mxu0 0.0
    %428 = vmatprep.subr.mxu0 0.0
    %429 = vmatpush1.msra.mxu0 0.0
    %430 = vmatprep.subr.mxu0 0.0
    %431 = vmatpush1.msra.mxu0 0.0
    %432 = vmatprep.subr.mxu0 0.0
    %433 = vmatpush1.msra.mxu0 0.0
    %434 = vmatprep.subr.mxu0 0.0
    %435 = vmatpush1.msra.mxu0 0.0
    %436 = vmatprep.subr.mxu0 0.0
    %437 = vmatpush1.msra.mxu0 0.0
    %438 = vmatprep.subr.mxu0 0.0
    %439 = vmatpush1.msra.mxu0 0.0
    %440 = vmatprep.subr.mxu0 0.0
    %441 = vmatpush1.msra.mxu0 0.0
    %442 = vmatprep.mubr.f32.mxu0 0.0
    %443 = vmatmul.mubr.f32.gmra.mrb[0].mxu0 %v375
    %v444 = vpop.f32.mrb[0].mxu0
    %v445 = vadd.f32 0.0, %v444
    %v446 = vpop.f32.mrb[0].mxu0
    %447 = vdwg.mxu0
    %v448 = vadd.f32 %v377, %v445
    %v449 = vtanh.pop %v448
    %450 = vst [vmem:[#allocation10 + $0x10] sm:$0xff] %v449
    %v451 = vld [vmem:[#allocation3 + $0x18] sm:$0xff]
    %452 = vmatprep.subr.mxu0 0.0
    %453 = vmatpush1.msra.mxu0 %v212
    %454 = vmatprep.subr.mxu0 0.0
    %455 = vmatpush1.msra.mxu0 %v213
    %456 = vmatprep.subr.mxu0 0.0
    %457 = vmatpush1.msra.mxu0 %v214
    %458 = vmatprep.subr.mxu0 0.0
    %459 = vmatpush1.msra.mxu0 %v215
    %460 = vmatprep.subr.mxu0 0.0
    %461 = vmatpush1.msra.mxu0 %v216
    %462 = vmatprep.subr.mxu0 0.0
    %463 = vmatpush1.msra.mxu0 %v217
    %464 = vmatprep.subr.mxu0 0.0
    %465 = vmatpush1.msra.mxu0 %v218
    %466 = vmatprep.subr.mxu0 0.0
    %467 = vmatpush1.msra.mxu0 %v219
    %468 = vmatprep.subr.mxu0 0.0
    %469 = vmatpush1.msra.mxu0 %v220
    %470 = vmatprep.subr.mxu0 0.0
    %471 = vmatpush1.msra.mxu0 %v221
    %472 = vmatprep.subr.mxu0 0.0
    %473 = vmatpush1.msra.mxu0 %v222
    %474 = vmatprep.subr.mxu0 0.0
    %475 = vmatpush1.msra.mxu0 %v223
    %476 = vmatprep.subr.mxu0 0.0
    %477 = vmatpush1.msra.mxu0 %v224
    %478 = vmatprep.subr.mxu0 0.0
    %479 = vmatpush1.msra.mxu0 %v225
    %480 = vmatprep.subr.mxu0 0.0
    %481 = vmatpush1.msra.mxu0 %v226
    %482 = vmatprep.subr.mxu0 0.0
    %483 = vmatpush1.msra.mxu0 %v227
    %484 = vmatprep.subr.mxu0 0.0
    %485 = vmatpush1.msra.mxu0 0.0
    %486 = vmatprep.subr.mxu0 0.0
    %487 = vmatpush1.msra.mxu0 0.0
    %488 = vmatprep.subr.mxu0 0.0
    %489 = vmatpush1.msra.mxu0 0.0
    %490 = vmatprep.subr.mxu0 0.0
    %491 = vmatpush1.msra.mxu0 0.0
    %492 = vmatprep.subr.mxu0 0.0
    %493 = vmatpush1.msra.mxu0 0.0
    %494 = vmatprep.subr.mxu0 0.0
    %495 = vmatpush1.msra.mxu0 0.0
    %496 = vmatprep.subr.mxu0 0.0
    %497 = vmatpush1.msra.mxu0 0.0
    %498 = vmatprep.subr.mxu0 0.0
    %499 = vmatpush1.msra.mxu0 0.0
    %500 = vmatprep.subr.mxu0 0.0
    %501 = vmatpush1.msra.mxu0 0.0
    %502 = vmatprep.subr.mxu0 0.0
    %503 = vmatpush1.msra.mxu0 0.0
    %504 = vmatprep.subr.mxu0 0.0
    %505 = vmatpush1.msra.mxu0 0.0
    %506 = vmatprep.subr.mxu0 0.0
    %507 = vmatpush1.msra.mxu0 0.0
    %508 = vmatprep.subr.mxu0 0.0
    %509 = vmatpush1.msra.mxu0 0.0
    %510 = vmatprep.subr.mxu0 0.0
    %511 = vmatpush1.msra.mxu0 0.0
    %512 = vmatprep.subr.mxu0 0.0
    %513 = vmatpush1.msra.mxu0 0.0
    %514 = vmatprep.subr.mxu0 0.0
    %515 = vmatpush1.msra.mxu0 0.0
    %516 = vmatprep.mubr.f32.mxu0 0.0
    %517 = vmatmul.mubr.f32.gmra.mrb[0].mxu0 %v449
    %v518 = vpop.f32.mrb[0].mxu0
    %v519 = vadd.f32 0.0, %v518
    %v520 = vpop.f32.mrb[0].mxu0
    %521 = vdwg.mxu0
    %v522 = vadd.f32 %v451, %v519
    %v523 = vtanh.pop %v522
    %524 = vst [vmem:[#allocation10 + $0x18] sm:$0xff] %v523
    %v525 = vld [vmem:[#allocation3 + $0x20] sm:$0xff]
    %526 = vmatprep.subr.mxu0 0.0
    %527 = vmatpush1.msra.mxu0 %v212
    %528 = vmatprep.subr.mxu0 0.0
    %529 = vmatpush1.msra.mxu0 %v213
    %530 = vmatprep.subr.mxu0 0.0
    %531 = vmatpush1.msra.mxu0 %v214
    %532 = vmatprep.subr.mxu0 0.0
    %533 = vmatpush1.msra.mxu0 %v215
    %534 = vmatprep.subr.mxu0 0.0
    %535 = vmatpush1.msra.mxu0 %v216
    %536 = vmatprep.subr.mxu0 0.0
    %537 = vmatpush1.msra.mxu0 %v217
    %538 = vmatprep.subr.mxu0 0.0
    %539 = vmatpush1.msra.mxu0 %v218
    %540 = vmatprep.subr.mxu0 0.0
    %541 = vmatpush1.msra.mxu0 %v219
    %542 = vmatprep.subr.mxu0 0.0
    %543 = vmatpush1.msra.mxu0 %v220
    %544 = vmatprep.subr.mxu0 0.0
    %545 = vmatpush1.msra.mxu0 %v221
    %546 = vmatprep.subr.mxu0 0.0
    %547 = vmatpush1.msra.mxu0 %v222
    %548 = vmatprep.subr.mxu0 0.0
    %549 = vmatpush1.msra.mxu0 %v223
    %550 = vmatprep.subr.mxu0 0.0
    %551 = vmatpush1.msra.mxu0 %v224
    %552 = vmatprep.subr.mxu0 0.0
    %553 = vmatpush1.msra.mxu0 %v225
    %554 = vmatprep.subr.mxu0 0.0
    %555 = vmatpush1.msra.mxu0 %v226
    %556 = vmatprep.subr.mxu0 0.0
    %557 = vmatpush1.msra.mxu0 %v227
    %558 = vmatprep.subr.mxu0 0.0
    %559 = vmatpush1.msra.mxu0 0.0
    %560 = vmatprep.subr.mxu0 0.0
    %561 = vmatpush1.msra.mxu0 0.0
    %562 = vmatprep.subr.mxu0 0.0
    %563 = vmatpush1.msra.mxu0 0.0
    %564 = vmatprep.subr.mxu0 0.0
    %565 = vmatpush1.msra.mxu0 0.0
    %566 = vmatprep.subr.mxu0 0.0
    %567 = vmatpush1.msra.mxu0 0.0
    %568 = vmatprep.subr.mxu0 0.0
    %569 = vmatpush1.msra.mxu0 0.0
    %570 = vmatprep.subr.mxu0 0.0
    %571 = vmatpush1.msra.mxu0 0.0
    %572 = vmatprep.subr.mxu0 0.0
    %573 = vmatpush1.msra.mxu0 0.0
    %574 = vmatprep.subr.mxu0 0.0
    %575 = vmatpush1.msra.mxu0 0.0
    %576 = vmatprep.subr.mxu0 0.0
    %577 = vmatpush1.msra.mxu0 0.0
    %578 = vmatprep.subr.mxu0 0.0
    %579 = vmatpush1.msra.mxu0 0.0
    %580 = vmatprep.subr.mxu0 0.0
    %581 = vmatpush1.msra.mxu0 0.0
    %582 = vmatprep.subr.mxu0 0.0
    %583 = vmatpush1.msra.mxu0 0.0
    %584 = vmatprep.subr.mxu0 0.0
    %585 = vmatpush1.msra.mxu0 0.0
    %586 = vmatprep.subr.mxu0 0.0
    %587 = vmatpush1.msra.mxu0 0.0
    %588 = vmatprep.subr.mxu0 0.0
    %589 = vmatpush1.msra.mxu0 0.0
    %590 = vmatprep.mubr.f32.mxu0 0.0
    %591 = vmatmul.mubr.f32.gmra.mrb[0].mxu0 %v523
    %v592 = vpop.f32.mrb[0].mxu0
    %v593 = vadd.f32 0.0, %v592
    %v594 = vpop.f32.mrb[0].mxu0
    %595 = vdwg.mxu0
    %v596 = vadd.f32 %v525, %v593
    %v597 = vtanh.pop %v596
    %598 = vst [vmem:[#allocation10 + $0x20] sm:$0xff] %v597
    %v599 = vld [vmem:[#allocation3 + $0x28] sm:$0xff]
    %600 = vmatprep.subr.mxu0 0.0
    %601 = vmatpush1.msra.mxu0 %v212
    %602 = vmatprep.subr.mxu0 0.0
    %603 = vmatpush1.msra.mxu0 %v213
    %604 = vmatprep.subr.mxu0 0.0
    %605 = vmatpush1.msra.mxu0 %v214
    %606 = vmatprep.subr.mxu0 0.0
    %607 = vmatpush1.msra.mxu0 %v215
    %608 = vmatprep.subr.mxu0 0.0
    %609 = vmatpush1.msra.mxu0 %v216
    %610 = vmatprep.subr.mxu0 0.0
    %611 = vmatpush1.msra.mxu0 %v217
    %612 = vmatprep.subr.mxu0 0.0
    %613 = vmatpush1.msra.mxu0 %v218
    %614 = vmatprep.subr.mxu0 0.0
    %615 = vmatpush1.msra.mxu0 %v219
    %616 = vmatprep.subr.mxu0 0.0
    %617 = vmatpush1.msra.mxu0 %v220
    %618 = vmatprep.subr.mxu0 0.0
    %619 = vmatpush1.msra.mxu0 %v221
    %620 = vmatprep.subr.mxu0 0.0
    %621 = vmatpush1.msra.mxu0 %v222
    %622 = vmatprep.subr.mxu0 0.0
    %623 = vmatpush1.msra.mxu0 %v223
    %624 = vmatprep.subr.mxu0 0.0
    %625 = vmatpush1.msra.mxu0 %v224
    %626 = vmatprep.subr.mxu0 0.0
    %627 = vmatpush1.msra.mxu0 %v225
    %628 = vmatprep.subr.mxu0 0.0
    %629 = vmatpush1.msra.mxu0 %v226
    %630 = vmatprep.subr.mxu0 0.0
    %631 = vmatpush1.msra.mxu0 %v227
    %632 = vmatprep.subr.mxu0 0.0
    %633 = vmatpush1.msra.mxu0 0.0
    %634 = vmatprep.subr.mxu0 0.0
    %635 = vmatpush1.msra.mxu0 0.0
    %636 = vmatprep.subr.mxu0 0.0
    %637 = vmatpush1.msra.mxu0 0.0
    %638 = vmatprep.subr.mxu0 0.0
    %639 = vmatpush1.msra.mxu0 0.0
    %640 = vmatprep.subr.mxu0 0.0
    %641 = vmatpush1.msra.mxu0 0.0
    %642 = vmatprep.subr.mxu0 0.0
    %643 = vmatpush1.msra.mxu0 0.0
    %644 = vmatprep.subr.mxu0 0.0
    %645 = vmatpush1.msra.mxu0 0.0
    %646 = vmatprep.subr.mxu0 0.0
    %647 = vmatpush1.msra.mxu0 0.0
    %648 = vmatprep.subr.mxu0 0.0
    %649 = vmatpush1.msra.mxu0 0.0
    %650 = vmatprep.subr.mxu0 0.0
    %651 = vmatpush1.msra.mxu0 0.0
    %652 = vmatprep.subr.mxu0 0.0
    %653 = vmatpush1.msra.mxu0 0.0
    %654 = vmatprep.subr.mxu0 0.0
    %655 = vmatpush1.msra.mxu0 0.0
    %656 = vmatprep.subr.mxu0 0.0
    %657 = vmatpush1.msra.mxu0 0.0
    %658 = vmatprep.subr.mxu0 0.0
    %659 = vmatpush1.msra.mxu0 0.0
    %660 = vmatprep.subr.mxu0 0.0
    %661 = vmatpush1.msra.mxu0 0.0
    %662 = vmatprep.subr.mxu0 0.0
    %663 = vmatpush1.msra.mxu0 0.0
    %664 = vmatprep.mubr.f32.mxu0 0.0
    %665 = vmatmul.mubr.f32.gmra.mrb[0].mxu0 %v597
    %v666 = vpop.f32.mrb[0].mxu0
    %v667 = vadd.f32 0.0, %v666
    %v668 = vpop.f32.mrb[0].mxu0
    %669 = vdwg.mxu0
    %v670 = vadd.f32 %v599, %v667
    %v671 = vtanh.pop %v670
    %672 = vst [vmem:[#allocation10 + $0x28] sm:$0xff] %v671
    %v673 = vld [vmem:[#allocation3 + $0x30] sm:$0xff]
    %674 = vmatprep.subr.mxu0 0.0
    %675 = vmatpush1.msra.mxu0 %v212
    %676 = vmatprep.subr.mxu0 0.0
    %677 = vmatpush1.msra.mxu0 %v213
    %678 = vmatprep.subr.mxu0 0.0
    %679 = vmatpush1.msra.mxu0 %v214
    %680 = vmatprep.subr.mxu0 0.0
    %681 = vmatpush1.msra.mxu0 %v215
    %682 = vmatprep.subr.mxu0 0.0
    %683 = vmatpush1.msra.mxu0 %v216
    %684 = vmatprep.subr.mxu0 0.0
    %685 = vmatpush1.msra.mxu0 %v217
    %686 = vmatprep.subr.mxu0 0.0
    %687 = vmatpush1.msra.mxu0 %v218
    %688 = vmatprep.subr.mxu0 0.0
    %689 = vmatpush1.msra.mxu0 %v219
    %690 = vmatprep.subr.mxu0 0.0
    %691 = vmatpush1.msra.mxu0 %v220
    %692 = vmatprep.subr.mxu0 0.0
    %693 = vmatpush1.msra.mxu0 %v221
    %694 = vmatprep.subr.mxu0 0.0
    %695 = vmatpush1.msra.mxu0 %v222
    %696 = vmatprep.subr.mxu0 0.0
    %697 = vmatpush1.msra.mxu0 %v223
    %698 = vmatprep.subr.mxu0 0.0
    %699 = vmatpush1.msra.mxu0 %v224
    %700 = vmatprep.subr.mxu0 0.0
    %701 = vmatpush1.msra.mxu0 %v225
    %702 = vmatprep.subr.mxu0 0.0
    %703 = vmatpush1.msra.mxu0 %v226
    %704 = vmatprep.subr.mxu0 0.0
    %705 = vmatpush1.msra.mxu0 %v227
    %706 = vmatprep.subr.mxu0 0.0
    %707 = vmatpush1.msra.mxu0 0.0
    %708 = vmatprep.subr.mxu0 0.0
    %709 = vmatpush1.msra.mxu0 0.0
    %710 = vmatprep.subr.mxu0 0.0
    %711 = vmatpush1.msra.mxu0 0.0
    %712 = vmatprep.subr.mxu0 0.0
    %713 = vmatpush1.msra.mxu0 0.0
    %714 = vmatprep.subr.mxu0 0.0
    %715 = vmatpush1.msra.mxu0 0.0
    %716 = vmatprep.subr.mxu0 0.0
    %717 = vmatpush1.msra.mxu0 0.0
    %718 = vmatprep.subr.mxu0 0.0
    %719 = vmatpush1.msra.mxu0 0.0
    %720 = vmatprep.subr.mxu0 0.0
    %721 = vmatpush1.msra.mxu0 0.0
    %722 = vmatprep.subr.mxu0 0.0
    %723 = vmatpush1.msra.mxu0 0.0
    %724 = vmatprep.subr.mxu0 0.0
    %725 = vmatpush1.msra.mxu0 0.0
    %726 = vmatprep.subr.mxu0 0.0
    %727 = vmatpush1.msra.mxu0 0.0
    %728 = vmatprep.subr.mxu0 0.0
    %729 = vmatpush1.msra.mxu0 0.0
    %730 = vmatprep.subr.mxu0 0.0
    %731 = vmatpush1.msra.mxu0 0.0
    %732 = vmatprep.subr.mxu0 0.0
    %733 = vmatpush1.msra.mxu0 0.0
    %734 = vmatprep.subr.mxu0 0.0
    %735 = vmatpush1.msra.mxu0 0.0
    %736 = vmatprep.subr.mxu0 0.0
    %737 = vmatpush1.msra.mxu0 0.0
    %738 = vmatprep.mubr.f32.mxu0 0.0
    %739 = vmatmul.mubr.f32.gmra.mrb[0].mxu0 %v671
    %v740 = vpop.f32.mrb[0].mxu0
    %v741 = vadd.f32 0.0, %v740
    %v742 = vpop.f32.mrb[0].mxu0
    %743 = vdwg.mxu0
    %v744 = vadd.f32 %v673, %v741
    %v745 = vtanh.pop %v744
    %746 = vst [vmem:[#allocation10 + $0x30] sm:$0xff] %v745
    %v747 = vld [vmem:[#allocation3 + $0x38] sm:$0xff]
    %748 = vmatprep.subr.mxu0 0.0
    %749 = vmatpush1.msra.mxu0 %v212
    %750 = vmatprep.subr.mxu0 0.0
    %751 = vmatpush1.msra.mxu0 %v213
    %752 = vmatprep.subr.mxu0 0.0
    %753 = vmatpush1.msra.mxu0 %v214
    %754 = vmatprep.subr.mxu0 0.0
    %755 = vmatpush1.msra.mxu0 %v215
    %756 = vmatprep.subr.mxu0 0.0
    %757 = vmatpush1.msra.mxu0 %v216
    %758 = vmatprep.subr.mxu0 0.0
    %759 = vmatpush1.msra.mxu0 %v217
    %760 = vmatprep.subr.mxu0 0.0
    %761 = vmatpush1.msra.mxu0 %v218
    %762 = vmatprep.subr.mxu0 0.0
    %763 = vmatpush1.msra.mxu0 %v219
    %764 = vmatprep.subr.mxu0 0.0
    %765 = vmatpush1.msra.mxu0 %v220
    %766 = vmatprep.subr.mxu0 0.0
    %767 = vmatpush1.msra.mxu0 %v221
    %768 = vmatprep.subr.mxu0 0.0
    %769 = vmatpush1.msra.mxu0 %v222
    %770 = vmatprep.subr.mxu0 0.0
    %771 = vmatpush1.msra.mxu0 %v223
    %772 = vmatprep.subr.mxu0 0.0
    %773 = vmatpush1.msra.mxu0 %v224
    %774 = vmatprep.subr.mxu0 0.0
    %775 = vmatpush1.msra.mxu0 %v225
    %776 = vmatprep.subr.mxu0 0.0
    %777 = vmatpush1.msra.mxu0 %v226
    %778 = vmatprep.subr.mxu0 0.0
    %779 = vmatpush1.msra.mxu0 %v227
    %780 = vmatprep.subr.mxu0 0.0
    %781 = vmatpush1.msra.mxu0 0.0
    %782 = vmatprep.subr.mxu0 0.0
    %783 = vmatpush1.msra.mxu0 0.0
    %784 = vmatprep.subr.mxu0 0.0
    %785 = vmatpush1.msra.mxu0 0.0
    %786 = vmatprep.subr.mxu0 0.0
    %787 = vmatpush1.msra.mxu0 0.0
    %788 = vmatprep.subr.mxu0 0.0
    %789 = vmatpush1.msra.mxu0 0.0
    %790 = vmatprep.subr.mxu0 0.0
    %791 = vmatpush1.msra.mxu0 0.0
    %792 = vmatprep.subr.mxu0 0.0
    %793 = vmatpush1.msra.mxu0 0.0
    %794 = vmatprep.subr.mxu0 0.0
    %795 = vmatpush1.msra.mxu0 0.0
    %796 = vmatprep.subr.mxu0 0.0
    %797 = vmatpush1.msra.mxu0 0.0
    %798 = vmatprep.subr.mxu0 0.0
    %799 = vmatpush1.msra.mxu0 0.0
    %800 = vmatprep.subr.mxu0 0.0
    %801 = vmatpush1.msra.mxu0 0.0
    %802 = vmatprep.subr.mxu0 0.0
    %803 = vmatpush1.msra.mxu0 0.0
    %804 = vmatprep.subr.mxu0 0.0
    %805 = vmatpush1.msra.mxu0 0.0
    %806 = vmatprep.subr.mxu0 0.0
    %807 = vmatpush1.msra.mxu0 0.0
    %808 = vmatprep.subr.mxu0 0.0
    %809 = vmatpush1.msra.mxu0 0.0
    %810 = vmatprep.subr.mxu0 0.0
    %811 = vmatpush1.msra.mxu0 0.0
    %812 = vmatprep.mubr.f32.mxu0 0.0
    %813 = vmatmul.mubr.f32.gmra.mrb[0].mxu0 %v745
    %v814 = vpop.f32.mrb[0].mxu0
    %v815 = vadd.f32 0.0, %v814
    %v816 = vpop.f32.mrb[0].mxu0
    %817 = vdwg.mxu0
    %v818 = vadd.f32 %v747, %v815
    %v819 = vtanh.pop %v818
    %820 = vst [vmem:[#allocation10 + $0x38] sm:$0xff] %v819
    %821 = vst [vmem:[#allocation2] sm:$0xff] %v819
    // Predicated region
    $region38: #{tpu_custom_call.1} parent=1 // pred_check
      _
    $region39: #{tpu_custom_call.1} parent=1 // pred_check_branch
      %823 = sbr.rel (0) target = $region41
    $region40: #{tpu_custom_call.1} parent=1 // pred_region
      %s825 = ssub.s32 1024, 1024
      %826 = vsyncadd [#allocation6], %s825
      %s827 = sshll.u32 [#allocation10], 4
      %s828 = int_to_ptr.vmem [resolvable:$true] %s827
      %833 = dma.vmem_to_hbm [thread:$0]  %s828, 1024, %s5, [#allocation6], 128, 128, 8
    $region41: #{tpu_custom_call.1} parent=1 // pred_fallthru
      _
    // Predicated region
    $region42: #{tpu_custom_call.1} parent=1 // pred_check
      _
    $region43: #{tpu_custom_call.1} parent=1 // pred_check_branch
      %835 = sbr.rel (0) target = $region45
    $region44: #{tpu_custom_call.1} parent=1 // pred_region
      %836 = dma.done [#allocation6], 1024
    $region45: #{tpu_custom_call.1} parent=1 // pred_fallthru
      _
    %837 = vsyncpa [#allocation5], 1
    %838 = vsyncpa [#allocation8], 1
    %839 = vsyncpa [#allocation6], 1

</llo_original>
